<compile_context>
chip_gen: v7x
topology: tpu7x:2x2x1
jax: 0.10.0
libtpu: 0.0.40
codegen_flags: <defaults>
</compile_context>

<pallas_src>
import jax
import jax.numpy as jnp
from jax.experimental import pallas as pl
from jax.experimental.pallas import tpu as pltpu

# Model dims (hidden sizes as in the PyTorch module; state_size chosen small).
STATE_SIZE = 64
HIDDEN = 256
LSTM_HIDDEN = 128
ACTION_SIZE = 16
HEAD_PAD = 128          # lane-dense fused-head width (>= ACTION_SIZE + 2)

# bf16 matmul operands with f32 accumulation (MXU-native on v6e/v7x, halves
# weight/state DMA).  Gate elementwise math and h/c state I/O remain f32.
MATMUL_DTYPE = jnp.bfloat16

# Batch tile cap: 1024 rows f32 is ~16 MB live per step -- fine everywhere
# once vmem_limit_bytes is raised (v5e default scoped limit is only 16 MiB)
# and still leaves headroom on v7x's 64 MiB physical VMEM.
MAX_BATCH_TILE = 1024
VMEM_LIMIT_BYTES = 64 * 1024 * 1024


def _round_up(x, m):
    return (x + m - 1) // m * m


def _ppo_kernel(state_ref, h_ref, c_ref, mask_ref,
                w1_ref, b1_ref, wg_ref, bg_ref, wh_ref, bh_ref,
                slab_ref, h_out_ref, c_out_ref):
    H = LSTM_HIDDEN
    mm = w1_ref.dtype

    # fc1 + relu  (bf16 operands, f32 accumulation)
    x = state_ref[...].astype(mm)
    h1 = jnp.maximum(
        jnp.dot(x, w1_ref[...], preferred_element_type=jnp.float32)
        + b1_ref[...], 0.0)

    # single-step LSTM.  Wih/Whh are fused offline into wg (384, 4H) and gate
    # columns are pre-permuted to [i, f, o, g]; biases pre-combined into bg.
    hin = jnp.concatenate([h1.astype(mm), h_ref[...].astype(mm)], axis=-1)
    gates = (jnp.dot(hin, wg_ref[...], preferred_element_type=jnp.float32)
             + bg_ref[...])
    sig = jax.nn.sigmoid(gates[:, :3 * H])        # one EUP pass: [i | f | o]
    g_g = jnp.tanh(gates[:, 3 * H:])              # one EUP pass: g
    i_g = sig[:, :H]
    f_g = sig[:, H:2 * H]
    o_g = sig[:, 2 * H:]
    c_new = f_g * c_ref[...] + i_g * g_g          # all f32
    h_new = o_g * jnp.tanh(c_new)
    c_out_ref[...] = c_new
    h_out_ref[...] = h_new

    # fused heads: one (H, 128) matmul; cols 0:16 actor logits, 16 fid, 17 coh.
    head = (jnp.dot(h_new.astype(mm), wh_ref[...],
                    preferred_element_type=jnp.float32) + bh_ref[...])

    # masked softmax on the 16-wide action slice only (mask operand is 16 wide).
    logits = head[:, :ACTION_SIZE] + mask_ref[...]
    m = jnp.max(logits, axis=-1, keepdims=True)
    e = jnp.exp(logits - m)
    inv = pl.reciprocal(jnp.sum(e, axis=-1, keepdims=True), approx=False)
    probs = e * inv
    probs_pad = jnp.concatenate(
        [probs, jnp.zeros((probs.shape[0], HEAD_PAD - ACTION_SIZE),
                          probs.dtype)], axis=-1)

    # single lane-dense 128-wide store: probs in action lanes, head values
    # (fid, coh, exact zeros) elsewhere.
    col = jax.lax.broadcasted_iota(jnp.int32, head.shape, 1)
    slab_ref[...] = jnp.where(col < ACTION_SIZE, probs_pad, head)


def init_params(key):
    """Deterministic parameter init matching the PyTorch module's reset_parameters."""
    ks = jax.random.split(key, 8)

    def xavier(k, fan_in, fan_out):
        lim = (6.0 / (fan_in + fan_out)) ** 0.5
        return jax.random.uniform(k, (fan_in, fan_out), jnp.float32, -lim, lim)

    # fc1
    w1 = xavier(ks[0], STATE_SIZE, HIDDEN)
    b1 = jnp.zeros((1, HIDDEN), jnp.float32)
    # LSTM (PyTorch default: uniform(-1/sqrt(H), 1/sqrt(H))), gate order i,f,g,o
    k_lstm = 1.0 / (LSTM_HIDDEN ** 0.5)
    wih = jax.random.uniform(ks[1], (HIDDEN, 4 * LSTM_HIDDEN), jnp.float32, -k_lstm, k_lstm)
    whh = jax.random.uniform(ks[2], (LSTM_HIDDEN, 4 * LSTM_HIDDEN), jnp.float32, -k_lstm, k_lstm)
    bih = jax.random.uniform(ks[3], (1, 4 * LSTM_HIDDEN), jnp.float32, -k_lstm, k_lstm)
    bhh = jax.random.uniform(ks[4], (1, 4 * LSTM_HIDDEN), jnp.float32, -k_lstm, k_lstm)
    # heads
    wa = xavier(ks[5], LSTM_HIDDEN, ACTION_SIZE)
    ba = jnp.zeros((1, ACTION_SIZE), jnp.float32)
    wf = xavier(ks[6], LSTM_HIDDEN, 1).reshape(1, LSTM_HIDDEN)
    bf = jnp.zeros((1, 1), jnp.float32)
    wc = xavier(ks[7], LSTM_HIDDEN, 1).reshape(1, LSTM_HIDDEN)
    bc = jnp.zeros((1, 1), jnp.float32)
    return (w1, b1, wih, bih, whh, bhh, wa, ba, wf, bf, wc, bc)


def pack_params(params):
    """Offline repack (do ONCE, outside the training step):
       * gate columns [i,f,g,o] -> [i,f,o,g], LSTM biases merged,
       * Wih / Whh fused into one (HIDDEN+H, 4H) matrix,
       * actor + both critic heads fused into one lane-dense (H, 128) matrix,
       * all matmul operands cast to MATMUL_DTYPE (biases stay f32)."""
    (w1, b1, wih, bih, whh, bhh, wa, ba, wf, bf, wc, bc) = params
    H = LSTM_HIDDEN

    def perm(w):  # columns i,f,g,o -> i,f,o,g
        return jnp.concatenate([w[..., :2 * H], w[..., 3 * H:4 * H],
                                w[..., 2 * H:3 * H]], axis=-1)

    wg = jnp.concatenate([perm(wih), perm(whh)], axis=0)      # (HIDDEN+H, 4H)
    bg = perm(bih + bhh)                                       # (1, 4H)

    w_heads = jnp.zeros((H, HEAD_PAD), jnp.float32)
    w_heads = w_heads.at[:, :ACTION_SIZE].set(wa)
    w_heads = w_heads.at[:, ACTION_SIZE].set(wf.reshape(H))
    w_heads = w_heads.at[:, ACTION_SIZE + 1].set(wc.reshape(H))
    b_heads = jnp.zeros((1, HEAD_PAD), jnp.float32)
    b_heads = b_heads.at[:, :ACTION_SIZE].set(ba)
    b_heads = b_heads.at[:, ACTION_SIZE].set(bf.reshape(()))
    b_heads = b_heads.at[:, ACTION_SIZE + 1].set(bc.reshape(()))

    return (w1.astype(MATMUL_DTYPE), b1,
            wg.astype(MATMUL_DTYPE), bg,
            w_heads.astype(MATMUL_DTYPE), b_heads)


@jax.jit
def ppo_forward(packed, state, h0, c0, action_mask):
    """state: (B, STATE_SIZE); h0/c0: (1, B or 1, LSTM_HIDDEN) (PyTorch layout);
    action_mask: (B, ACTION_SIZE) additive mask (pass zeros for None)."""
    (w1, b1, wg, bg, wh, bh) = packed
    B = state.shape[0]
    H = LSTM_HIDDEN

    # mimic the PyTorch hidden-state batch repeat
    if h0.shape[1] != B:
        h0 = jnp.broadcast_to(h0, (1, B, H))
        c0 = jnp.broadcast_to(c0, (1, B, H))
    h2 = h0.reshape(B, H).astype(jnp.float32)
    c2 = c0.reshape(B, H).astype(jnp.float32)

    state = state.astype(MATMUL_DTYPE)
    mask = action_mask.astype(jnp.float32)

    # Pad batch only to a multiple of 8 (sublane); no copy when B % 8 == 0.
    # The grid uses a partial last block when Bp % B_T != 0 (writes masked).
    Bp = _round_up(max(B, 1), 8)
    if Bp != B:
        pad = Bp - B
        state = jnp.pad(state, ((0, pad), (0, 0)))
        h2 = jnp.pad(h2, ((0, pad), (0, 0)))
        c2 = jnp.pad(c2, ((0, pad), (0, 0)))
        mask = jnp.pad(mask, ((0, pad), (0, 0)))
    B_T = min(MAX_BATCH_TILE, Bp)

    row = lambda i: (i, 0)     # batch-tiled operands
    const = lambda i: (0, 0)   # resident weights / biases (DMA'd once)

    in_specs = [
        pl.BlockSpec((B_T, STATE_SIZE), row),
        pl.BlockSpec((B_T, H), row),
        pl.BlockSpec((B_T, H), row),
        pl.BlockSpec((B_T, ACTION_SIZE), row),
        pl.BlockSpec((STATE_SIZE, HIDDEN), const),
        pl.BlockSpec((1, HIDDEN), const),
        pl.BlockSpec((HIDDEN + H, 4 * H), const),
        pl.BlockSpec((1, 4 * H), const),
        pl.BlockSpec((H, HEAD_PAD), const),
        pl.BlockSpec((1, HEAD_PAD), const),
    ]
    out_specs = (
        pl.BlockSpec((B_T, HEAD_PAD), row),
        pl.BlockSpec((B_T, H), row),
        pl.BlockSpec((B_T, H), row),
    )
    out_shapes = (
        jax.ShapeDtypeStruct((Bp, HEAD_PAD), jnp.float32),   # fused head slab
        jax.ShapeDtypeStruct((Bp, H), jnp.float32),          # h'
        jax.ShapeDtypeStruct((Bp, H), jnp.float32),          # c'
    )

    slab, h_new, c_new = pl.pallas_call(
        _ppo_kernel,
        grid=(pl.cdiv(Bp, B_T),),
        in_specs=in_specs,
        out_specs=out_specs,
        out_shape=out_shapes,
        # h/c updated in place (recurrent state): inputs 1,2 alias outputs 1,2
        input_output_aliases={1: 1, 2: 2},
        compiler_params=pltpu.CompilerParams(
            dimension_semantics=("parallel",),
            vmem_limit_bytes=VMEM_LIMIT_BYTES),
    )(state, h2, c2, mask, w1, b1, wg, bg, wh, bh)

    probs = slab[:B, :ACTION_SIZE]
    fidelity_value = jnp.squeeze(slab[:B, ACTION_SIZE:ACTION_SIZE + 1])
    coherence_value = jnp.squeeze(slab[:B, ACTION_SIZE + 1:ACTION_SIZE + 2])
    new_hidden = (h_new[:B].reshape(1, B, H), c_new[:B].reshape(1, B, H))
    return probs, fidelity_value, coherence_value, new_hidden


def ppo_forward_ref(params, state, h0, c0, action_mask):
    """Pure-JAX f32 reference on the ORIGINAL (unpacked) params."""
    (w1, b1, wih, bih, whh, bhh, wa, ba, wf, bf, wc, bc) = params
    B = state.shape[0]
    H = LSTM_HIDDEN
    h_prev = h0.reshape(B, H)
    c_prev = c0.reshape(B, H)
    h1 = jnp.maximum(state @ w1 + b1, 0.0)
    gates = h1 @ wih + bih + h_prev @ whh + bhh
    i_g = jax.nn.sigmoid(gates[:, 0:H])
    f_g = jax.nn.sigmoid(gates[:, H:2 * H])
    g_g = jnp.tanh(gates[:, 2 * H:3 * H])
    o_g = jax.nn.sigmoid(gates[:, 3 * H:4 * H])
    c_new = f_g * c_prev + i_g * g_g
    h_new = o_g * jnp.tanh(c_new)
    logits = h_new @ wa + ba + action_mask
    probs = jax.nn.softmax(logits, axis=-1)
    fid = jnp.squeeze(jnp.sum(h_new * wf, axis=-1, keepdims=True) + bf)
    coh = jnp.squeeze(jnp.sum(h_new * wc, axis=-1, keepdims=True) + bc)
    return probs, fid, coh, (h_new.reshape(1, B, H), c_new.reshape(1, B, H))


if __name__ == "__main__":
    key = jax.random.PRNGKey(0)
    k_param, k_state = jax.random.split(key, 2)

    B = 2
    params = init_params(k_param)
    packed = pack_params(params)
    state = jax.random.normal(k_state, (B, STATE_SIZE), jnp.float32)
    # init_lstm_hidden equivalent (zeros), PyTorch layout (num_layers=1, B, H)
    h0 = jnp.zeros((1, B, LSTM_HIDDEN), jnp.float32)
    c0 = jnp.zeros((1, B, LSTM_HIDDEN), jnp.float32)
    action_mask = jnp.zeros((B, ACTION_SIZE), jnp.float32)  # None -> zeros

    probs, fid, coh, (h_new, c_new) = ppo_forward(packed, state, h0, c0, action_mask)
    jax.block_until_ready((probs, fid, coh, h_new, c_new))

    # sanity check against pure-f32 reference (bf16 matmul operands in the
    # kernel -> slightly loosened tolerances; exact-reciprocal softmax -> probs
    # still sum to 1 tightly)
    r_probs, r_fid, r_coh, (r_h, r_c) = ppo_forward_ref(params, state, h0, c0, action_mask)
    assert probs.shape == (B, ACTION_SIZE) and fid.shape == (B,) and coh.shape == (B,)
    assert jnp.allclose(jnp.sum(probs, axis=-1), 1.0, atol=1e-3), "probs not normalized"
    assert jnp.allclose(probs, r_probs, atol=1.5e-2), "probs mismatch"
    assert jnp.allclose(fid, r_fid, atol=3e-2), "fidelity mismatch"
    assert jnp.allclose(coh, r_coh, atol=3e-2), "coherence mismatch"
    assert jnp.allclose(h_new, r_h, atol=1e-2), "h mismatch"
    assert jnp.allclose(c_new, r_c, atol=1e-2), "c mismatch"

    print("KERNEL_OK")
</pallas_src>

<mosaic_0001>
module attributes {stable_mosaic.version = 11 : i64} {
  func.func @_ppo_kernel(%arg0: i32, %arg1: memref<8x64xbf16, #tpu.memory_space<vmem>>, %arg2: memref<8x128xf32, #tpu.memory_space<vmem>>, %arg3: memref<8x128xf32, #tpu.memory_space<vmem>>, %arg4: memref<8x16xf32, #tpu.memory_space<vmem>>, %arg5: memref<64x256xbf16, #tpu.memory_space<vmem>>, %arg6: memref<1x256xf32, #tpu.memory_space<vmem>>, %arg7: memref<384x512xbf16, #tpu.memory_space<vmem>>, %arg8: memref<1x512xf32, #tpu.memory_space<vmem>>, %arg9: memref<128x128xbf16, #tpu.memory_space<vmem>>, %arg10: memref<1x128xf32, #tpu.memory_space<vmem>>, %arg11: memref<8x128xf32, #tpu.memory_space<vmem>>, %arg12: memref<8x128xf32, #tpu.memory_space<vmem>>, %arg13: memref<8x128xf32, #tpu.memory_space<vmem>>) attributes {dimension_semantics = [#tpu.dimension_semantics<parallel>], iteration_bounds = array<i64: 1>, scalar_prefetch = 0 : i64, scratch_operands = 0 : i64, tpu.core_type = #tpu.core_type<tc>, window_params = [{transform_indices = @transform_0, window_bounds = array<i64: 8, 64>}, {transform_indices = @transform_1, window_bounds = array<i64: 8, 128>}, {transform_indices = @transform_2, window_bounds = array<i64: 8, 128>}, {transform_indices = @transform_3, window_bounds = array<i64: 8, 16>}, {pipeline_mode = #tpu.pipeline_mode<synchronous>, transform_indices = @transform_4, window_bounds = array<i64: 64, 256>}, {pipeline_mode = #tpu.pipeline_mode<synchronous>, transform_indices = @transform_5, window_bounds = array<i64: 1, 256>}, {pipeline_mode = #tpu.pipeline_mode<synchronous>, transform_indices = @transform_6, window_bounds = array<i64: 384, 512>}, {pipeline_mode = #tpu.pipeline_mode<synchronous>, transform_indices = @transform_7, window_bounds = array<i64: 1, 512>}, {pipeline_mode = #tpu.pipeline_mode<synchronous>, transform_indices = @transform_8, window_bounds = array<i64: 128, 128>}, {pipeline_mode = #tpu.pipeline_mode<synchronous>, transform_indices = @transform_9, window_bounds = array<i64: 1, 128>}, {transform_indices = @transform_10, window_bounds = array<i64: 8, 128>}, {transform_indices = @transform_11, window_bounds = array<i64: 8, 128>}, {transform_indices = @transform_12, window_bounds = array<i64: 8, 128>}]} {
    %c0 = arith.constant 0 : index
    %c0_0 = arith.constant 0 : index
    %0 = vector.load %arg1[%c0, %c0_0] : memref<8x64xbf16, #tpu.memory_space<vmem>>, vector<8x64xbf16>
    %c0_1 = arith.constant 0 : index
    %c0_2 = arith.constant 0 : index
    %1 = vector.load %arg5[%c0_1, %c0_2] : memref<64x256xbf16, #tpu.memory_space<vmem>>, vector<64x256xbf16>
    %cst = arith.constant dense<0.000000e+00> : vector<8x256xf32>
    %2 = tpu.matmul %0, %1, %cst {dimension_numbers = #tpu.dot_dimension_numbers<[1], [0], [0], [1], [0, 0, 1, 1], [], []>} : vector<8x64xbf16>, vector<64x256xbf16>, vector<8x256xf32> -> vector<8x256xf32>
    %c0_3 = arith.constant 0 : index
    %c0_4 = arith.constant 0 : index
    %3 = vector.load %arg6[%c0_3, %c0_4] : memref<1x256xf32, #tpu.memory_space<vmem>>, vector<1x256xf32>
    %4 = vector.broadcast %3 : vector<1x256xf32> to vector<8x256xf32>
    %5 = arith.addf %2, %4 : vector<8x256xf32>
    %cst_5 = arith.constant 0.000000e+00 : f32
    %6 = vector.broadcast %cst_5 : f32 to vector<8x256xf32>
    %7 = arith.maximumf %5, %6 : vector<8x256xf32>
    %8 = arith.truncf %7 : vector<8x256xf32> to vector<8x256xbf16>
    %c0_6 = arith.constant 0 : index
    %c0_7 = arith.constant 0 : index
    %9 = vector.load %arg2[%c0_6, %c0_7] : memref<8x128xf32, #tpu.memory_space<vmem>>, vector<8x128xf32>
    %10 = arith.truncf %9 : vector<8x128xf32> to vector<8x128xbf16>
    %11 = tpu.concatenate %8, %10 in 1 : vector<8x256xbf16>, vector<8x128xbf16> -> vector<8x384xbf16>
    %c0_8 = arith.constant 0 : index
    %c0_9 = arith.constant 0 : index
    %12 = vector.load %arg7[%c0_8, %c0_9] : memref<384x512xbf16, #tpu.memory_space<vmem>>, vector<384x512xbf16>
    %cst_10 = arith.constant dense<0.000000e+00> : vector<8x512xf32>
    %13 = tpu.matmul %11, %12, %cst_10 {dimension_numbers = #tpu.dot_dimension_numbers<[1], [0], [0], [1], [0, 0, 1, 1], [], []>} : vector<8x384xbf16>, vector<384x512xbf16>, vector<8x512xf32> -> vector<8x512xf32>
    %c0_11 = arith.constant 0 : index
    %c0_12 = arith.constant 0 : index
    %14 = vector.load %arg8[%c0_11, %c0_12] : memref<1x512xf32, #tpu.memory_space<vmem>>, vector<1x512xf32>
    %15 = vector.broadcast %14 : vector<1x512xf32> to vector<8x512xf32>
    %16 = arith.addf %13, %15 : vector<8x512xf32>
    %17 = vector.extract_strided_slice %16 {offsets = [0, 0], sizes = [8, 384], strides = [1, 1]} : vector<8x512xf32> to vector<8x384xf32>
    %18 = arith.negf %17 : vector<8x384xf32>
    %19 = math.exp %18 : vector<8x384xf32>
    %cst_13 = arith.constant 1.000000e+00 : f32
    %20 = vector.broadcast %cst_13 : f32 to vector<8x384xf32>
    %21 = arith.addf %20, %19 : vector<8x384xf32>
    %22 = arith.divf %20, %21 : vector<8x384xf32>
    %23 = vector.extract_strided_slice %16 {offsets = [0, 384], sizes = [8, 128], strides = [1, 1]} : vector<8x512xf32> to vector<8x128xf32>
    %24 = math.tanh %23 : vector<8x128xf32>
    %25 = vector.extract_strided_slice %22 {offsets = [0, 0], sizes = [8, 128], strides = [1, 1]} : vector<8x384xf32> to vector<8x128xf32>
    %26 = vector.extract_strided_slice %22 {offsets = [0, 128], sizes = [8, 128], strides = [1, 1]} : vector<8x384xf32> to vector<8x128xf32>
    %27 = vector.extract_strided_slice %22 {offsets = [0, 256], sizes = [8, 128], strides = [1, 1]} : vector<8x384xf32> to vector<8x128xf32>
    %c0_14 = arith.constant 0 : index
    %c0_15 = arith.constant 0 : index
    %28 = vector.load %arg3[%c0_14, %c0_15] : memref<8x128xf32, #tpu.memory_space<vmem>>, vector<8x128xf32>
    %29 = arith.mulf %26, %28 : vector<8x128xf32>
    %30 = arith.mulf %25, %24 : vector<8x128xf32>
    %31 = arith.addf %29, %30 : vector<8x128xf32>
    %32 = math.tanh %31 : vector<8x128xf32>
    %33 = arith.mulf %27, %32 : vector<8x128xf32>
    %c0_16 = arith.constant 0 : index
    %c0_17 = arith.constant 0 : index
    %34 = vector.load %arg13[%c0_16, %c0_17] : memref<8x128xf32, #tpu.memory_space<vmem>>, vector<8x128xf32>
    tpu.vector_store %arg13[%c0_16, %c0_17], %31 {strides = array<i32>} : memref<8x128xf32, #tpu.memory_space<vmem>>, vector<8x128xf32>,
    %c0_18 = arith.constant 0 : index
    %c0_19 = arith.constant 0 : index
    %35 = vector.load %arg12[%c0_18, %c0_19] : memref<8x128xf32, #tpu.memory_space<vmem>>, vector<8x128xf32>
    tpu.vector_store %arg12[%c0_18, %c0_19], %33 {strides = array<i32>} : memref<8x128xf32, #tpu.memory_space<vmem>>, vector<8x128xf32>,
    %36 = arith.truncf %33 : vector<8x128xf32> to vector<8x128xbf16>
    %c0_20 = arith.constant 0 : index
    %c0_21 = arith.constant 0 : index
    %37 = vector.load %arg9[%c0_20, %c0_21] : memref<128x128xbf16, #tpu.memory_space<vmem>>, vector<128x128xbf16>
    %cst_22 = arith.constant dense<0.000000e+00> : vector<8x128xf32>
    %38 = tpu.matmul %36, %37, %cst_22 {dimension_numbers = #tpu.dot_dimension_numbers<[1], [0], [0], [1], [0, 0, 1, 1], [], []>} : vector<8x128xbf16>, vector<128x128xbf16>, vector<8x128xf32> -> vector<8x128xf32>
    %c0_23 = arith.constant 0 : index
    %c0_24 = arith.constant 0 : index
    %39 = vector.load %arg10[%c0_23, %c0_24] : memref<1x128xf32, #tpu.memory_space<vmem>>, vector<1x128xf32>
    %40 = vector.broadcast %39 : vector<1x128xf32> to vector<8x128xf32>
    %41 = arith.addf %38, %40 : vector<8x128xf32>
    %42 = vector.extract_strided_slice %41 {offsets = [0, 0], sizes = [8, 16], strides = [1, 1]} : vector<8x128xf32> to vector<8x16xf32>
    %c0_25 = arith.constant 0 : index
    %c0_26 = arith.constant 0 : index
    %43 = vector.load %arg4[%c0_25, %c0_26] : memref<8x16xf32, #tpu.memory_space<vmem>>, vector<8x16xf32>
    %44 = arith.addf %42, %43 : vector<8x16xf32>
    %cst_27 = arith.constant dense<0xFF800000> : vector<8xf32>
    %45 = vector.multi_reduction <maximumf>, %44, %cst_27 [1] : vector<8x16xf32> to vector<8xf32>
    %46 = vector.shape_cast %45 : vector<8xf32> to vector<8x1xf32>
    %47 = vector.broadcast %46 : vector<8x1xf32> to vector<8x16xf32>
    %48 = arith.subf %44, %47 : vector<8x16xf32>
    %49 = math.exp %48 : vector<8x16xf32>
    %cst_28 = arith.constant dense<0.000000e+00> : vector<8xf32>
    %50 = vector.multi_reduction <add>, %49, %cst_28 [1] : vector<8x16xf32> to vector<8xf32>
    %51 = vector.shape_cast %50 : vector<8xf32> to vector<8x1xf32>
    %52 = tpu.reciprocal %51 : vector<8x1xf32> -> vector<8x1xf32>
    %53 = vector.broadcast %52 : vector<8x1xf32> to vector<8x16xf32>
    %54 = arith.mulf %49, %53 : vector<8x16xf32>
    %cst_29 = arith.constant 0.000000e+00 : f32
    %55 = vector.broadcast %cst_29 : f32 to vector<8x112xf32>
    %56 = tpu.concatenate %54, %55 in 1 : vector<8x16xf32>, vector<8x112xf32> -> vector<8x128xf32>
    %57 = tpu.iota {dimensions = array<i32: 1>} : vector<8x128xi32>
    %c16_i32 = arith.constant 16 : i32
    %58 = vector.broadcast %c16_i32 : i32 to vector<8x128xi32>
    %59 = arith.cmpi slt, %57, %58 : vector<8x128xi32>
    %60 = arith.select %59, %56, %41 : vector<8x128xi1>, vector<8x128xf32>
    %c0_30 = arith.constant 0 : index
    %c0_31 = arith.constant 0 : index
    %61 = vector.load %arg11[%c0_30, %c0_31] : memref<8x128xf32, #tpu.memory_space<vmem>>, vector<8x128xf32>
    tpu.vector_store %arg11[%c0_30, %c0_31], %60 {strides = array<i32>} : memref<8x128xf32, #tpu.memory_space<vmem>>, vector<8x128xf32>,
    return
  }
  func.func @transform_0(%arg0: i32) -> (i32, i32) {
    %c0_i32 = arith.constant 0 : i32
    %c0_i32_0 = arith.constant 0 : i32
    return %arg0, %c0_i32 : i32, i32
  }
  func.func @transform_1(%arg0: i32) -> (i32, i32) {
    %c0_i32 = arith.constant 0 : i32
    %c0_i32_0 = arith.constant 0 : i32
    return %arg0, %c0_i32 : i32, i32
  }
  func.func @transform_2(%arg0: i32) -> (i32, i32) {
    %c0_i32 = arith.constant 0 : i32
    %c0_i32_0 = arith.constant 0 : i32
    return %arg0, %c0_i32 : i32, i32
  }
  func.func @transform_3(%arg0: i32) -> (i32, i32) {
    %c0_i32 = arith.constant 0 : i32
    %c0_i32_0 = arith.constant 0 : i32
    return %arg0, %c0_i32 : i32, i32
  }
  func.func @transform_4(%arg0: i32) -> (i32, i32) {
    %c0_i32 = arith.constant 0 : i32
    %c0_i32_0 = arith.constant 0 : i32
    %c0_i32_1 = arith.constant 0 : i32
    return %c0_i32, %c0_i32_0 : i32, i32
  }
  func.func @transform_5(%arg0: i32) -> (i32, i32) {
    %c0_i32 = arith.constant 0 : i32
    %c0_i32_0 = arith.constant 0 : i32
    %c0_i32_1 = arith.constant 0 : i32
    return %c0_i32, %c0_i32_0 : i32, i32
  }
  func.func @transform_6(%arg0: i32) -> (i32, i32) {
    %c0_i32 = arith.constant 0 : i32
    %c0_i32_0 = arith.constant 0 : i32
    %c0_i32_1 = arith.constant 0 : i32
    return %c0_i32, %c0_i32_0 : i32, i32
  }
  func.func @transform_7(%arg0: i32) -> (i32, i32) {
    %c0_i32 = arith.constant 0 : i32
    %c0_i32_0 = arith.constant 0 : i32
    %c0_i32_1 = arith.constant 0 : i32
    return %c0_i32, %c0_i32_0 : i32, i32
  }
  func.func @transform_8(%arg0: i32) -> (i32, i32) {
    %c0_i32 = arith.constant 0 : i32
    %c0_i32_0 = arith.constant 0 : i32
    %c0_i32_1 = arith.constant 0 : i32
    return %c0_i32, %c0_i32_0 : i32, i32
  }
  func.func @transform_9(%arg0: i32) -> (i32, i32) {
    %c0_i32 = arith.constant 0 : i32
    %c0_i32_0 = arith.constant 0 : i32
    %c0_i32_1 = arith.constant 0 : i32
    return %c0_i32, %c0_i32_0 : i32, i32
  }
  func.func @transform_10(%arg0: i32) -> (i32, i32) {
    %c0_i32 = arith.constant 0 : i32
    %c0_i32_0 = arith.constant 0 : i32
    return %arg0, %c0_i32 : i32, i32
  }
  func.func @transform_11(%arg0: i32) -> (i32, i32) {
    %c0_i32 = arith.constant 0 : i32
    %c0_i32_0 = arith.constant 0 : i32
    return %arg0, %c0_i32 : i32, i32
  }
  func.func @transform_12(%arg0: i32) -> (i32, i32) {
    %c0_i32 = arith.constant 0 : i32
    %c0_i32_0 = arith.constant 0 : i32
    return %arg0, %c0_i32 : i32, i32
  }
}

</mosaic_0001>

<llo_original>
// kernel: ppo_forward.1
$region0: #{ppo_forward.1}
  #allocation0 [shape = 'u32[]', space=smem, size = 0x4, offset = 0x4, fixed_abs, tag = 'smem constant byte address 0x4 - core index']
  #allocation1 [shape = 'u32[144,128]{1,0:T(1,128)}', space=vmem, size = 0x12000, scoped, tag = 'internal scratch']
  %s0 = inlined_call_operand.hbm [shape: bf16[8,64], index: 0, kind: input, shape index: {}]
  %s1 = inlined_call_operand.hbm [shape: f32[8,128], index: 1, kind: input, shape index: {}, may-alias: {1,11}]
  %s2 = inlined_call_operand.hbm [shape: f32[8,128], index: 2, kind: input, shape index: {}, may-alias: {2,12}]
  %s3 = inlined_call_operand.hbm [shape: f32[8,16], index: 3, kind: input, shape index: {}]
  %s4 = inlined_call_operand.hbm [shape: bf16[64,256], index: 4, kind: input, shape index: {}]
  %s5 = inlined_call_operand.hbm [shape: f32[1,256], index: 5, kind: input, shape index: {}]
  %s6 = inlined_call_operand.hbm [shape: bf16[384,512], index: 6, kind: input, shape index: {}]
  %s7 = inlined_call_operand.hbm [shape: f32[1,512], index: 7, kind: input, shape index: {}]
  %s8 = inlined_call_operand.hbm [shape: bf16[128,128], index: 8, kind: input, shape index: {}]
  %s9 = inlined_call_operand.hbm [shape: f32[1,128], index: 9, kind: input, shape index: {}]
  %s10 = inlined_call_operand.hbm [shape: f32[8,128], index: 10, kind: output, shape index: {0}]
  %s11 = inlined_call_operand.hbm [shape: f32[8,128], index: 11, kind: output, shape index: {1}, may-alias: {1,11}]
  %s12 = inlined_call_operand.hbm [shape: f32[8,128], index: 12, kind: output, shape index: {2}, may-alias: {2,12}]
  %13 = xla_tuple %s10, %s11, %s12
  %s14 = sld [smem:[#allocation0]]
  $region106: #{ppo_forward.1} parent=0
    _
  %s16 = ssub.s32 1, %s14
  %s17 = scalar_select 0, %s16, %s14
  $region1: #{ppo_forward.1} parent=0
    #allocation2 [shape = 'u8[2048]{0}', space=vmem, size = 0x800, scoped, tag = 'input window, operand 0, single buffered']
    #allocation3 [shape = 's32[1]{0}', space=sflag, size = 0x4, scoped, tag = 'scoped memory for ppo_forward.1']
    #allocation4 [shape = 's32[1]{0}', space=sflag, size = 0x4, scoped, tag = 'scoped memory for ppo_forward.1']
    #allocation5 [shape = 'u8[4096]{0}', space=vmem, size = 0x1000, scoped, tag = 'input window, operand 1, single buffered']
    #allocation6 [shape = 's32[1]{0}', space=sflag, size = 0x4, scoped, tag = 'scoped memory for ppo_forward.1']
    #allocation7 [shape = 'u8[4096]{0}', space=vmem, size = 0x1000, scoped, tag = 'input window, operand 2, single buffered']
    #allocation8 [shape = 'u8[4096]{0}', space=vmem, size = 0x1000, scoped, tag = 'input window, operand 3, single buffered']
    #allocation9 [shape = 's32[1]{0}', space=sflag, size = 0x4, scoped, tag = 'scoped memory for ppo_forward.1']
    #allocation10 [shape = 'u8[32768]{0}', space=vmem, size = 0x8000, scoped, tag = 'input window, operand 4, single buffered']
    #allocation11 [shape = 'u8[1024]{0}', space=vmem, size = 0x400, scoped, tag = 'input window, operand 5, single buffered']
    #allocation12 [shape = 's32[1]{0}', space=sflag, size = 0x4, scoped, tag = 'scoped memory for ppo_forward.1']
    #allocation13 [shape = 'u8[393216]{0}', space=vmem, size = 0x60000, scoped, tag = 'input window, operand 6, single buffered']
    #allocation14 [shape = 'u8[2048]{0}', space=vmem, size = 0x800, scoped, tag = 'input window, operand 7, single buffered']
    #allocation15 [shape = 's32[1]{0}', space=sflag, size = 0x4, scoped, tag = 'scoped memory for ppo_forward.1']
    #allocation16 [shape = 'u8[32768]{0}', space=vmem, size = 0x8000, scoped, tag = 'input window, operand 8, single buffered']
    #allocation17 [shape = 'u8[512]{0}', space=vmem, size = 0x400, scoped, tag = 'input window, operand 9, single buffered']
    #allocation18 [shape = 's32[1]{0}', space=sflag, size = 0x4, scoped, tag = 'scoped memory for ppo_forward.1']
    #allocation19 [shape = 'u8[4096]{0}', space=vmem, size = 0x1000, scoped, tag = 'output window, operand 0, single buffered']
    #allocation20 [shape = 'u8[4096]{0}', space=vmem, size = 0x1000, scoped, tag = 'output window, operand 1, single buffered']
    #allocation21 [shape = 's32[1]{0}', space=sflag, size = 0x4, scoped, tag = 'scoped memory for ppo_forward.1']
    #allocation22 [shape = 'u8[4096]{0}', space=vmem, size = 0x1000, scoped, tag = 'output window, operand 2, single buffered']
    %18 = vsyncpa [#allocation3], 0
    %19 = vsyncpa [#allocation6], 0
    %20 = vsyncpa [#allocation9], 0
    %21 = vsyncpa [#allocation12], 0
    %22 = vsyncpa [#allocation15], 0
    %23 = vsyncpa [#allocation18], 0
    %24 = vsyncpa [#allocation4], 0
    %25 = vsyncpa [#allocation21], 0
    // Predicated region
    $region2: #{ppo_forward.1} parent=1 // pred_check
      _
    $region3: #{ppo_forward.1} parent=1 // pred_check_branch
      %27 = sbr.rel (0) target = $region5
    $region4: #{ppo_forward.1} parent=1 // pred_region
      %s29 = ssub.s32 64, 64
      %30 = vsyncadd [#allocation3], %s29
      %s32 = sshll.u32 [#allocation2], 4
      %s33 = int_to_ptr.vmem [resolvable:$true] %s32
      %35 = dma.hbm_to_vmem [thread:$0]  %s0, 64, %s33, [#allocation3]
    $region5: #{ppo_forward.1} parent=1 // pred_fallthru
      _
    // Predicated region
    $region6: #{ppo_forward.1} parent=1 // pred_check
      _
    $region7: #{ppo_forward.1} parent=1 // pred_check_branch
      %37 = sbr.rel (0) target = $region9
    $region8: #{ppo_forward.1} parent=1 // pred_region
      %s39 = ssub.s32 128, 128
      %40 = vsyncadd [#allocation6], %s39
      %s42 = sshll.u32 [#allocation5], 4
      %s43 = int_to_ptr.vmem [resolvable:$true] %s42
      %45 = dma.hbm_to_vmem [thread:$0]  %s1, 128, %s43, [#allocation6]
    $region9: #{ppo_forward.1} parent=1 // pred_fallthru
      _
    // Predicated region
    $region10: #{ppo_forward.1} parent=1 // pred_check
      _
    $region11: #{ppo_forward.1} parent=1 // pred_check_branch
      %47 = sbr.rel (0) target = $region13
    $region12: #{ppo_forward.1} parent=1 // pred_region
      %s49 = ssub.s32 128, 128
      %50 = vsyncadd [#allocation6], %s49
      %s52 = sshll.u32 [#allocation7], 4
      %s53 = int_to_ptr.vmem [resolvable:$true] %s52
      %55 = dma.hbm_to_vmem [thread:$0]  %s2, 128, %s53, [#allocation6]
    $region13: #{ppo_forward.1} parent=1 // pred_fallthru
      _
    // Predicated region
    $region14: #{ppo_forward.1} parent=1 // pred_check
      _
    $region15: #{ppo_forward.1} parent=1 // pred_check_branch
      %57 = sbr.rel (0) target = $region17
    $region16: #{ppo_forward.1} parent=1 // pred_region
      %s59 = ssub.s32 128, 128
      %60 = vsyncadd [#allocation9], %s59
      %s62 = sshll.u32 [#allocation8], 4
      %s63 = int_to_ptr.vmem [resolvable:$true] %s62
      %65 = dma.hbm_to_vmem [thread:$0]  %s3, 128, %s63, [#allocation9]
    $region17: #{ppo_forward.1} parent=1 // pred_fallthru
      _
    // Predicated region
    $region18: #{ppo_forward.1} parent=1 // pred_check
      _
    $region19: #{ppo_forward.1} parent=1 // pred_check_branch
      %67 = sbr.rel (0) target = $region21
    $region20: #{ppo_forward.1} parent=1 // pred_region
      %s69 = ssub.s32 1024, 1024
      %70 = vsyncadd [#allocation9], %s69
      %s71 = sshll.u32 [#allocation10], 4
      %s72 = int_to_ptr.vmem [resolvable:$true] %s71
      %77 = dma.hbm_to_vmem [thread:$0]  %s4, 1024, %s72, [#allocation9], 128, 128, 8
    $region21: #{ppo_forward.1} parent=1 // pred_fallthru
      _
    // Predicated region
    $region22: #{ppo_forward.1} parent=1 // pred_check
      _
    $region23: #{ppo_forward.1} parent=1 // pred_check_branch
      %79 = sbr.rel (0) target = $region25
    $region24: #{ppo_forward.1} parent=1 // pred_region
      %s81 = ssub.s32 32, 32
      %82 = vsyncadd [#allocation12], %s81
      %s84 = sshll.u32 [#allocation11], 4
      %s85 = int_to_ptr.vmem [resolvable:$true] %s84
      %87 = dma.hbm_to_vmem [thread:$0]  %s5, 32, %s85, [#allocation12]
    $region25: #{ppo_forward.1} parent=1 // pred_fallthru
      _
    // Predicated region
    $region26: #{ppo_forward.1} parent=1 // pred_check
      _
    $region27: #{ppo_forward.1} parent=1 // pred_check_branch
      %89 = sbr.rel (0) target = $region29
    $region28: #{ppo_forward.1} parent=1 // pred_region
      %s91 = ssub.s32 12288, 12288
      %92 = vsyncadd [#allocation12], %s91
      %s93 = sshll.u32 [#allocation13], 4
      %s94 = int_to_ptr.vmem [resolvable:$true] %s93
      %99 = dma.hbm_to_vmem [thread:$0]  %s6, 12288, %s94, [#allocation12], 256, 256, 16
    $region29: #{ppo_forward.1} parent=1 // pred_fallthru
      _
    // Predicated region
    $region30: #{ppo_forward.1} parent=1 // pred_check
      _
    $region31: #{ppo_forward.1} parent=1 // pred_check_branch
      %101 = sbr.rel (0) target = $region33
    $region32: #{ppo_forward.1} parent=1 // pred_region
      %s103 = ssub.s32 64, 64
      %104 = vsyncadd [#allocation15], %s103
      %s106 = sshll.u32 [#allocation14], 4
      %s107 = int_to_ptr.vmem [resolvable:$true] %s106
      %109 = dma.hbm_to_vmem [thread:$0]  %s7, 64, %s107, [#allocation15]
    $region33: #{ppo_forward.1} parent=1 // pred_fallthru
      _
    // Predicated region
    $region34: #{ppo_forward.1} parent=1 // pred_check
      _
    $region35: #{ppo_forward.1} parent=1 // pred_check_branch
      %111 = sbr.rel (0) target = $region37
    $region36: #{ppo_forward.1} parent=1 // pred_region
      %s113 = ssub.s32 1024, 1024
      %114 = vsyncadd [#allocation15], %s113
      %s115 = sshll.u32 [#allocation16], 4
      %s116 = int_to_ptr.vmem [resolvable:$true] %s115
      %121 = dma.hbm_to_vmem [thread:$0]  %s8, 1024, %s116, [#allocation15], 64, 64, 4
    $region37: #{ppo_forward.1} parent=1 // pred_fallthru
      _
    // Predicated region
    $region38: #{ppo_forward.1} parent=1 // pred_check
      _
    $region39: #{ppo_forward.1} parent=1 // pred_check_branch
      %123 = sbr.rel (0) target = $region41
    $region40: #{ppo_forward.1} parent=1 // pred_region
      %s125 = ssub.s32 16, 16
      %126 = vsyncadd [#allocation18], %s125
      %s128 = sshll.u32 [#allocation17], 4
      %s129 = int_to_ptr.vmem [resolvable:$true] %s128
      %131 = dma.hbm_to_vmem [thread:$0]  %s9, 16, %s129, [#allocation18]
    $region41: #{ppo_forward.1} parent=1 // pred_fallthru
      _
    // Predicated region
    $region42: #{ppo_forward.1} parent=1 // pred_check
      _
    $region43: #{ppo_forward.1} parent=1 // pred_check_branch
      %133 = sbr.rel (0) target = $region45
    $region44: #{ppo_forward.1} parent=1 // pred_region
      %134 = dma.done [#allocation3], 64
    $region45: #{ppo_forward.1} parent=1 // pred_fallthru
      _
    // Predicated region
    $region46: #{ppo_forward.1} parent=1 // pred_check
      _
    $region47: #{ppo_forward.1} parent=1 // pred_check_branch
      %136 = sbr.rel (0) target = $region49
    $region48: #{ppo_forward.1} parent=1 // pred_region
      %137 = dma.done [#allocation6], 128
    $region49: #{ppo_forward.1} parent=1 // pred_fallthru
      _
    // Predicated region
    $region50: #{ppo_forward.1} parent=1 // pred_check
      _
    $region51: #{ppo_forward.1} parent=1 // pred_check_branch
      %139 = sbr.rel (0) target = $region53
    $region52: #{ppo_forward.1} parent=1 // pred_region
      %140 = dma.done [#allocation6], 128
    $region53: #{ppo_forward.1} parent=1 // pred_fallthru
      _
    // Predicated region
    $region54: #{ppo_forward.1} parent=1 // pred_check
      _
    $region55: #{ppo_forward.1} parent=1 // pred_check_branch
      %142 = sbr.rel (0) target = $region57
    $region56: #{ppo_forward.1} parent=1 // pred_region
      %143 = dma.done [#allocation9], 128
    $region57: #{ppo_forward.1} parent=1 // pred_fallthru
      _
    // Predicated region
    $region58: #{ppo_forward.1} parent=1 // pred_check
      _
    $region59: #{ppo_forward.1} parent=1 // pred_check_branch
      %145 = sbr.rel (0) target = $region61
    $region60: #{ppo_forward.1} parent=1 // pred_region
      %146 = dma.done [#allocation9], 1024
    $region61: #{ppo_forward.1} parent=1 // pred_fallthru
      _
    // Predicated region
    $region62: #{ppo_forward.1} parent=1 // pred_check
      _
    $region63: #{ppo_forward.1} parent=1 // pred_check_branch
      %148 = sbr.rel (0) target = $region65
    $region64: #{ppo_forward.1} parent=1 // pred_region
      %149 = dma.done [#allocation12], 32
    $region65: #{ppo_forward.1} parent=1 // pred_fallthru
      _
    // Predicated region
    $region66: #{ppo_forward.1} parent=1 // pred_check
      _
    $region67: #{ppo_forward.1} parent=1 // pred_check_branch
      %151 = sbr.rel (0) target = $region69
    $region68: #{ppo_forward.1} parent=1 // pred_region
      %152 = dma.done [#allocation12], 12288
    $region69: #{ppo_forward.1} parent=1 // pred_fallthru
      _
    // Predicated region
    $region70: #{ppo_forward.1} parent=1 // pred_check
      _
    $region71: #{ppo_forward.1} parent=1 // pred_check_branch
      %154 = sbr.rel (0) target = $region73
    $region72: #{ppo_forward.1} parent=1 // pred_region
      %155 = dma.done [#allocation15], 64
    $region73: #{ppo_forward.1} parent=1 // pred_fallthru
      _
    // Predicated region
    $region74: #{ppo_forward.1} parent=1 // pred_check
      _
    $region75: #{ppo_forward.1} parent=1 // pred_check_branch
      %157 = sbr.rel (0) target = $region77
    $region76: #{ppo_forward.1} parent=1 // pred_region
      %158 = dma.done [#allocation15], 1024
    $region77: #{ppo_forward.1} parent=1 // pred_fallthru
      _
    // Predicated region
    $region78: #{ppo_forward.1} parent=1 // pred_check
      _
    $region79: #{ppo_forward.1} parent=1 // pred_check_branch
      %160 = sbr.rel (0) target = $region81
    $region80: #{ppo_forward.1} parent=1 // pred_region
      %161 = dma.done [#allocation18], 16
    $region81: #{ppo_forward.1} parent=1 // pred_fallthru
      _
    %v163 = vld [vmem:[#allocation2] sm:$0xf]
    %v164 = vld [vmem:[#allocation10] sm:$0xff]
    %v165 = vld [vmem:[#allocation10 + $0x8] sm:$0xff]
    %v166 = vld [vmem:[#allocation10 + $0x10] sm:$0xff]
    %v167 = vld [vmem:[#allocation10 + $0x18] sm:$0xff]
    %v168 = vld [vmem:[#allocation10 + $0x20] sm:$0xff]
    %v169 = vld [vmem:[#allocation10 + $0x28] sm:$0xff]
    %v170 = vld [vmem:[#allocation10 + $0x30] sm:$0xff]
    %v171 = vld [vmem:[#allocation10 + $0x38] sm:$0xff]
    %v172 = vld [vmem:[#allocation11] sm:$0x3]
    %v174 = vlaneseq
    %v175 = vshrl.u32 %v174, 7
    %v176 = vsub.s32 0, %v175
    %v177 = vrot.slane %v172, %v176
    %v178 = vlaneseq
    %v179 = vshrl.u32 %v178, 7
    %v180 = vsub.s32 1, %v179
    %v181 = vrot.slane %v172, %v180
    %v192 = vunpack.c.l.b16 %v164
    %v193 = vunpack.c.h.b16 %v164
    %v194 = vunpack.c.l.b16 %v165
    %v195 = vunpack.c.h.b16 %v165
    %v196 = vunpack.c.l.b16 %v166
    %v197 = vunpack.c.h.b16 %v166
    %v198 = vunpack.c.l.b16 %v167
    %v199 = vunpack.c.h.b16 %v167
    %v200 = vunpack.c.l.b16 %v168
    %v201 = vunpack.c.h.b16 %v168
    %v202 = vunpack.c.l.b16 %v169
    %v203 = vunpack.c.h.b16 %v169
    %v204 = vunpack.c.l.b16 %v170
    %v205 = vunpack.c.h.b16 %v170
    %v206 = vunpack.c.l.b16 %v171
    %v207 = vunpack.c.h.b16 %v171
    %v208 = vpack.c.b16 %v194, %v192
    %v209 = vpack.c.b16 %v195, %v193
    %v210 = vpack.c.b16 %v198, %v196
    %v211 = vpack.c.b16 %v199, %v197
    %v212 = vpack.c.b16 %v202, %v200
    %v213 = vpack.c.b16 %v203, %v201
    %v214 = vpack.c.b16 %v206, %v204
    %v215 = vpack.c.b16 %v207, %v205
    %vm224 = vcmask 523264
    %v226 = vsel %vm224, %v163, 0
    %228 = vmatprep.subr.bf16.mxu0 %v209
    %229 = vmatpush1.bf16.msra.mxu0 %v208
    %230 = vmatprep.subr.bf16.mxu0 %v211
    %231 = vmatpush1.bf16.msra.mxu0 %v210
    %232 = vmatprep.subr.bf16.mxu0 %v213
    %233 = vmatpush1.bf16.msra.mxu0 %v212
    %234 = vmatprep.subr.bf16.mxu0 %v215
    %235 = vmatpush1.bf16.msra.mxu0 %v214
    %236 = vmatprep.subr.bf16.mxu0 0
    %237 = vmatpush1.bf16.msra.mxu0 0
    %238 = vmatprep.subr.bf16.mxu0 0
    %239 = vmatpush1.bf16.msra.mxu0 0
    %240 = vmatprep.subr.bf16.mxu0 0
    %241 = vmatpush1.bf16.msra.mxu0 0
    %242 = vmatprep.subr.bf16.mxu0 0
    %243 = vmatpush1.bf16.msra.mxu0 0
    %244 = vmatprep.subr.bf16.mxu0 0
    %245 = vmatpush1.bf16.msra.mxu0 0
    %246 = vmatprep.subr.bf16.mxu0 0
    %247 = vmatpush1.bf16.msra.mxu0 0
    %248 = vmatprep.subr.bf16.mxu0 0
    %249 = vmatpush1.bf16.msra.mxu0 0
    %250 = vmatprep.subr.bf16.mxu0 0
    %251 = vmatpush1.bf16.msra.mxu0 0
    %252 = vmatprep.subr.bf16.mxu0 0
    %253 = vmatpush1.bf16.msra.mxu0 0
    %254 = vmatprep.subr.bf16.mxu0 0
    %255 = vmatpush1.bf16.msra.mxu0 0
    %256 = vmatprep.subr.bf16.mxu0 0
    %257 = vmatpush1.bf16.msra.mxu0 0
    %258 = vmatprep.subr.bf16.mxu0 0
    %259 = vmatpush1.bf16.msra.mxu0 0
    %260 = vmatprep.mubr.bf16.mxu0 0
    %261 = vmatmul.mubr.bf16.gmra.mrb[0].mxu0 %v226
    %v262 = vpop.f32.mrb[0].mxu0
    %v263 = vadd.f32 %v177, %v262
    %v264 = vpop.f32.mrb[0].mxu0
    %v265 = vadd.f32 %v181, %v264
    %v266 = vpop.f32.mrb[0].mxu0
    %v267 = vpop.f32.mrb[0].mxu0
    %268 = vdwg.mxu0
    %v269 = vmax.f32 %v263, 0.0
    %v270 = vmax.f32 %v265, 0.0
    %v271 = vpack.c.bf16 %v269, %v269
    %v272 = vpack.c.bf16 %v270, %v270
    %v273 = vld [vmem:[#allocation5] sm:$0xff]
    %v274 = vpack.c.bf16 %v273, %v273
    %v275 = vld [vmem:[#allocation13] sm:$0xff]
    %v276 = vld [vmem:[#allocation13 + $0x8] sm:$0xff]
    %v277 = vld [vmem:[#allocation13 + $0x10] sm:$0xff]
    %v278 = vld [vmem:[#allocation13 + $0x18] sm:$0xff]
    %v279 = vld [vmem:[#allocation13 + $0x20] sm:$0xff]
    %v280 = vld [vmem:[#allocation13 + $0x28] sm:$0xff]
    %v281 = vld [vmem:[#allocation13 + $0x30] sm:$0xff]
    %v282 = vld [vmem:[#allocation13 + $0x38] sm:$0xff]
    %v283 = vld [vmem:[#allocation13 + $0x40] sm:$0xff]
    %v284 = vld [vmem:[#allocation13 + $0x48] sm:$0xff]
    %v285 = vld [vmem:[#allocation13 + $0x50] sm:$0xff]
    %v286 = vld [vmem:[#allocation13 + $0x58] sm:$0xff]
    %v287 = vld [vmem:[#allocation13 + $0x60] sm:$0xff]
    %v288 = vld [vmem:[#allocation13 + $0x68] sm:$0xff]
    %v289 = vld [vmem:[#allocation13 + $0x70] sm:$0xff]
    %v290 = vld [vmem:[#allocation13 + $0x78] sm:$0xff]
    %v291 = vld [vmem:[#allocation13 + $0x80] sm:$0xff]
    %v292 = vld [vmem:[#allocation13 + $0x88] sm:$0xff]
    %v293 = vld [vmem:[#allocation13 + $0x90] sm:$0xff]
    %v294 = vld [vmem:[#allocation13 + $0x98] sm:$0xff]
    %v295 = vld [vmem:[#allocation13 + $0xa0] sm:$0xff]
    %v296 = vld [vmem:[#allocation13 + $0xa8] sm:$0xff]
    %v297 = vld [vmem:[#allocation13 + $0xb0] sm:$0xff]
    %v298 = vld [vmem:[#allocation13 + $0xb8] sm:$0xff]
    %v299 = vld [vmem:[#allocation13 + $0xc0] sm:$0xff]
    %v300 = vld [vmem:[#allocation13 + $0xc8] sm:$0xff]
    %v301 = vld [vmem:[#allocation13 + $0xd0] sm:$0xff]
    %v302 = vld [vmem:[#allocation13 + $0xd8] sm:$0xff]
    %v303 = vld [vmem:[#allocation13 + $0xe0] sm:$0xff]
    %v304 = vld [vmem:[#allocation13 + $0xe8] sm:$0xff]
    %v305 = vld [vmem:[#allocation13 + $0xf0] sm:$0xff]
    %v306 = vld [vmem:[#allocation13 + $0xf8] sm:$0xff]
    %v307 = vld [vmem:[#allocation13 + $0x100] sm:$0xff]
    %v308 = vld [vmem:[#allocation13 + $0x108] sm:$0xff]
    %v309 = vld [vmem:[#allocation13 + $0x110] sm:$0xff]
    %v310 = vld [vmem:[#allocation13 + $0x118] sm:$0xff]
    %v311 = vld [vmem:[#allocation13 + $0x120] sm:$0xff]
    %v312 = vld [vmem:[#allocation13 + $0x128] sm:$0xff]
    %v313 = vld [vmem:[#allocation13 + $0x130] sm:$0xff]
    %v314 = vld [vmem:[#allocation13 + $0x138] sm:$0xff]
    %v315 = vld [vmem:[#allocation13 + $0x140] sm:$0xff]
    %v316 = vld [vmem:[#allocation13 + $0x148] sm:$0xff]
    %v317 = vld [vmem:[#allocation13 + $0x150] sm:$0xff]
    %v318 = vld [vmem:[#allocation13 + $0x158] sm:$0xff]
    %v319 = vld [vmem:[#allocation13 + $0x160] sm:$0xff]
    %v320 = vld [vmem:[#allocation13 + $0x168] sm:$0xff]
    %v321 = vld [vmem:[#allocation13 + $0x170] sm:$0xff]
    %v322 = vld [vmem:[#allocation13 + $0x178] sm:$0xff]
    %v323 = vld [vmem:[#allocation13 + $0x180] sm:$0xff]
    %v324 = vld [vmem:[#allocation13 + $0x188] sm:$0xff]
    %v325 = vld [vmem:[#allocation13 + $0x190] sm:$0xff]
    %v326 = vld [vmem:[#allocation13 + $0x198] sm:$0xff]
    %v327 = vld [vmem:[#allocation13 + $0x1a0] sm:$0xff]
    %v328 = vld [vmem:[#allocation13 + $0x1a8] sm:$0xff]
    %v329 = vld [vmem:[#allocation13 + $0x1b0] sm:$0xff]
    %v330 = vld [vmem:[#allocation13 + $0x1b8] sm:$0xff]
    %v331 = vld [vmem:[#allocation13 + $0x1c0] sm:$0xff]
    %v332 = vld [vmem:[#allocation13 + $0x1c8] sm:$0xff]
    %v333 = vld [vmem:[#allocation13 + $0x1d0] sm:$0xff]
    %v334 = vld [vmem:[#allocation13 + $0x1d8] sm:$0xff]
    %v335 = vld [vmem:[#allocation13 + $0x1e0] sm:$0xff]
    %v336 = vld [vmem:[#allocation13 + $0x1e8] sm:$0xff]
    %v337 = vld [vmem:[#allocation13 + $0x1f0] sm:$0xff]
    %v338 = vld [vmem:[#allocation13 + $0x1f8] sm:$0xff]
    %v339 = vld [vmem:[#allocation13 + $0x200] sm:$0xff]
    %v340 = vld [vmem:[#allocation13 + $0x208] sm:$0xff]
    %v341 = vld [vmem:[#allocation13 + $0x210] sm:$0xff]
    %v342 = vld [vmem:[#allocation13 + $0x218] sm:$0xff]
    %v343 = vld [vmem:[#allocation13 + $0x220] sm:$0xff]
    %v344 = vld [vmem:[#allocation13 + $0x228] sm:$0xff]
    %v345 = vld [vmem:[#allocation13 + $0x230] sm:$0xff]
    %v346 = vld [vmem:[#allocation13 + $0x238] sm:$0xff]
    %v347 = vld [vmem:[#allocation13 + $0x240] sm:$0xff]
    %v348 = vld [vmem:[#allocation13 + $0x248] sm:$0xff]
    %v349 = vld [vmem:[#allocation13 + $0x250] sm:$0xff]
    %v350 = vld [vmem:[#allocation13 + $0x258] sm:$0xff]
    %v351 = vld [vmem:[#allocation13 + $0x260] sm:$0xff]
    %v352 = vld [vmem:[#allocation13 + $0x268] sm:$0xff]
    %v353 = vld [vmem:[#allocation13 + $0x270] sm:$0xff]
    %v354 = vld [vmem:[#allocation13 + $0x278] sm:$0xff]
    %v355 = vld [vmem:[#allocation13 + $0x280] sm:$0xff]
    %v356 = vld [vmem:[#allocation13 + $0x288] sm:$0xff]
    %v357 = vld [vmem:[#allocation13 + $0x290] sm:$0xff]
    %v358 = vld [vmem:[#allocation13 + $0x298] sm:$0xff]
    %v359 = vld [vmem:[#allocation13 + $0x2a0] sm:$0xff]
    %v360 = vld [vmem:[#allocation13 + $0x2a8] sm:$0xff]
    %v361 = vld [vmem:[#allocation13 + $0x2b0] sm:$0xff]
    %v362 = vld [vmem:[#allocation13 + $0x2b8] sm:$0xff]
    %v363 = vld [vmem:[#allocation13 + $0x2c0] sm:$0xff]
    %v364 = vld [vmem:[#allocation13 + $0x2c8] sm:$0xff]
    %v365 = vld [vmem:[#allocation13 + $0x2d0] sm:$0xff]
    %v366 = vld [vmem:[#allocation13 + $0x2d8] sm:$0xff]
    %v367 = vld [vmem:[#allocation13 + $0x2e0] sm:$0xff]
    %v368 = vld [vmem:[#allocation13 + $0x2e8] sm:$0xff]
    %v369 = vld [vmem:[#allocation13 + $0x2f0] sm:$0xff]
    %v370 = vld [vmem:[#allocation13 + $0x2f8] sm:$0xff]
    %v371 = vld [vmem:[#allocation14] sm:$0xf]
    %v373 = vlaneseq
    %v374 = vshrl.u32 %v373, 7
    %v375 = vsub.s32 0, %v374
    %v376 = vrot.slane %v371, %v375
    %v377 = vlaneseq
    %v378 = vshrl.u32 %v377, 7
    %v379 = vsub.s32 1, %v378
    %v380 = vrot.slane %v371, %v379
    %v381 = vlaneseq
    %v382 = vshrl.u32 %v381, 7
    %v383 = vsub.s32 2, %v382
    %v384 = vrot.slane %v371, %v383
    %v385 = vlaneseq
    %v386 = vshrl.u32 %v385, 7
    %v387 = vsub.s32 3, %v386
    %v388 = vrot.slane %v371, %v387
    %v489 = vunpack.c.l.b16 %v275
    %v490 = vunpack.c.h.b16 %v275
    %v491 = vunpack.c.l.b16 %v276
    %v492 = vunpack.c.h.b16 %v276
    %v493 = vunpack.c.l.b16 %v277
    %v494 = vunpack.c.h.b16 %v277
    %v495 = vunpack.c.l.b16 %v278
    %v496 = vunpack.c.h.b16 %v278
    %v497 = vunpack.c.l.b16 %v279
    %v498 = vunpack.c.h.b16 %v279
    %v499 = vunpack.c.l.b16 %v280
    %v500 = vunpack.c.h.b16 %v280
    %v501 = vunpack.c.l.b16 %v281
    %v502 = vunpack.c.h.b16 %v281
    %v503 = vunpack.c.l.b16 %v282
    %v504 = vunpack.c.h.b16 %v282
    %v505 = vunpack.c.l.b16 %v283
    %v506 = vunpack.c.h.b16 %v283
    %v507 = vunpack.c.l.b16 %v284
    %v508 = vunpack.c.h.b16 %v284
    %v509 = vunpack.c.l.b16 %v285
    %v510 = vunpack.c.h.b16 %v285
    %v511 = vunpack.c.l.b16 %v286
    %v512 = vunpack.c.h.b16 %v286
    %v513 = vunpack.c.l.b16 %v287
    %v514 = vunpack.c.h.b16 %v287
    %v515 = vunpack.c.l.b16 %v288
    %v516 = vunpack.c.h.b16 %v288
    %v517 = vunpack.c.l.b16 %v289
    %v518 = vunpack.c.h.b16 %v289
    %v519 = vunpack.c.l.b16 %v290
    %v520 = vunpack.c.h.b16 %v290
    %v521 = vunpack.c.l.b16 %v291
    %v522 = vunpack.c.h.b16 %v291
    %v523 = vunpack.c.l.b16 %v292
    %v524 = vunpack.c.h.b16 %v292
    %v525 = vunpack.c.l.b16 %v293
    %v526 = vunpack.c.h.b16 %v293
    %v527 = vunpack.c.l.b16 %v294
    %v528 = vunpack.c.h.b16 %v294
    %v529 = vunpack.c.l.b16 %v295
    %v530 = vunpack.c.h.b16 %v295
    %v531 = vunpack.c.l.b16 %v296
    %v532 = vunpack.c.h.b16 %v296
    %v533 = vunpack.c.l.b16 %v297
    %v534 = vunpack.c.h.b16 %v297
    %v535 = vunpack.c.l.b16 %v298
    %v536 = vunpack.c.h.b16 %v298
    %v537 = vunpack.c.l.b16 %v299
    %v538 = vunpack.c.h.b16 %v299
    %v539 = vunpack.c.l.b16 %v300
    %v540 = vunpack.c.h.b16 %v300
    %v541 = vunpack.c.l.b16 %v301
    %v542 = vunpack.c.h.b16 %v301
    %v543 = vunpack.c.l.b16 %v302
    %v544 = vunpack.c.h.b16 %v302
    %v545 = vunpack.c.l.b16 %v303
    %v546 = vunpack.c.h.b16 %v303
    %v547 = vunpack.c.l.b16 %v304
    %v548 = vunpack.c.h.b16 %v304
    %v549 = vunpack.c.l.b16 %v305
    %v550 = vunpack.c.h.b16 %v305
    %v551 = vunpack.c.l.b16 %v306
    %v552 = vunpack.c.h.b16 %v306
    %v553 = vunpack.c.l.b16 %v307
    %v554 = vunpack.c.h.b16 %v307
    %v555 = vunpack.c.l.b16 %v308
    %v556 = vunpack.c.h.b16 %v308
    %v557 = vunpack.c.l.b16 %v309
    %v558 = vunpack.c.h.b16 %v309
    %v559 = vunpack.c.l.b16 %v310
    %v560 = vunpack.c.h.b16 %v310
    %v561 = vunpack.c.l.b16 %v311
    %v562 = vunpack.c.h.b16 %v311
    %v563 = vunpack.c.l.b16 %v312
    %v564 = vunpack.c.h.b16 %v312
    %v565 = vunpack.c.l.b16 %v313
    %v566 = vunpack.c.h.b16 %v313
    %v567 = vunpack.c.l.b16 %v314
    %v568 = vunpack.c.h.b16 %v314
    %v569 = vunpack.c.l.b16 %v315
    %v570 = vunpack.c.h.b16 %v315
    %v571 = vunpack.c.l.b16 %v316
    %v572 = vunpack.c.h.b16 %v316
    %v573 = vunpack.c.l.b16 %v317
    %v574 = vunpack.c.h.b16 %v317
    %v575 = vunpack.c.l.b16 %v318
    %v576 = vunpack.c.h.b16 %v318
    %v577 = vunpack.c.l.b16 %v319
    %v578 = vunpack.c.h.b16 %v319
    %v579 = vunpack.c.l.b16 %v320
    %v580 = vunpack.c.h.b16 %v320
    %v581 = vunpack.c.l.b16 %v321
    %v582 = vunpack.c.h.b16 %v321
    %v583 = vunpack.c.l.b16 %v322
    %v584 = vunpack.c.h.b16 %v322
    %v585 = vunpack.c.l.b16 %v323
    %v586 = vunpack.c.h.b16 %v323
    %v587 = vunpack.c.l.b16 %v324
    %v588 = vunpack.c.h.b16 %v324
    %v589 = vunpack.c.l.b16 %v325
    %v590 = vunpack.c.h.b16 %v325
    %v591 = vunpack.c.l.b16 %v326
    %v592 = vunpack.c.h.b16 %v326
    %v593 = vunpack.c.l.b16 %v327
    %v594 = vunpack.c.h.b16 %v327
    %v595 = vunpack.c.l.b16 %v328
    %v596 = vunpack.c.h.b16 %v328
    %v597 = vunpack.c.l.b16 %v329
    %v598 = vunpack.c.h.b16 %v329
    %v599 = vunpack.c.l.b16 %v330
    %v600 = vunpack.c.h.b16 %v330
    %v601 = vunpack.c.l.b16 %v331
    %v602 = vunpack.c.h.b16 %v331
    %v603 = vunpack.c.l.b16 %v332
    %v604 = vunpack.c.h.b16 %v332
    %v605 = vunpack.c.l.b16 %v333
    %v606 = vunpack.c.h.b16 %v333
    %v607 = vunpack.c.l.b16 %v334
    %v608 = vunpack.c.h.b16 %v334
    %v609 = vunpack.c.l.b16 %v335
    %v610 = vunpack.c.h.b16 %v335
    %v611 = vunpack.c.l.b16 %v336
    %v612 = vunpack.c.h.b16 %v336
    %v613 = vunpack.c.l.b16 %v337
    %v614 = vunpack.c.h.b16 %v337
    %v615 = vunpack.c.l.b16 %v338
    %v616 = vunpack.c.h.b16 %v338
    %v617 = vunpack.c.l.b16 %v339
    %v618 = vunpack.c.h.b16 %v339
    %v619 = vunpack.c.l.b16 %v340
    %v620 = vunpack.c.h.b16 %v340
    %v621 = vunpack.c.l.b16 %v341
    %v622 = vunpack.c.h.b16 %v341
    %v623 = vunpack.c.l.b16 %v342
    %v624 = vunpack.c.h.b16 %v342
    %v625 = vunpack.c.l.b16 %v343
    %v626 = vunpack.c.h.b16 %v343
    %v627 = vunpack.c.l.b16 %v344
    %v628 = vunpack.c.h.b16 %v344
    %v629 = vunpack.c.l.b16 %v345
    %v630 = vunpack.c.h.b16 %v345
    %v631 = vunpack.c.l.b16 %v346
    %v632 = vunpack.c.h.b16 %v346
    %v633 = vunpack.c.l.b16 %v347
    %v634 = vunpack.c.h.b16 %v347
    %v635 = vunpack.c.l.b16 %v348
    %v636 = vunpack.c.h.b16 %v348
    %v637 = vunpack.c.l.b16 %v349
    %v638 = vunpack.c.h.b16 %v349
    %v639 = vunpack.c.l.b16 %v350
    %v640 = vunpack.c.h.b16 %v350
    %v641 = vunpack.c.l.b16 %v351
    %v642 = vunpack.c.h.b16 %v351
    %v643 = vunpack.c.l.b16 %v352
    %v644 = vunpack.c.h.b16 %v352
    %v645 = vunpack.c.l.b16 %v353
    %v646 = vunpack.c.h.b16 %v353
    %v647 = vunpack.c.l.b16 %v354
    %v648 = vunpack.c.h.b16 %v354
    %v649 = vunpack.c.l.b16 %v355
    %v650 = vunpack.c.h.b16 %v355
    %v651 = vunpack.c.l.b16 %v356
    %v652 = vunpack.c.h.b16 %v356
    %v653 = vunpack.c.l.b16 %v357
    %v654 = vunpack.c.h.b16 %v357
    %v655 = vunpack.c.l.b16 %v358
    %v656 = vunpack.c.h.b16 %v358
    %v657 = vunpack.c.l.b16 %v359
    %v658 = vunpack.c.h.b16 %v359
    %v659 = vunpack.c.l.b16 %v360
    %v660 = vunpack.c.h.b16 %v360
    %v661 = vunpack.c.l.b16 %v361
    %v662 = vunpack.c.h.b16 %v361
    %v663 = vunpack.c.l.b16 %v362
    %v664 = vunpack.c.h.b16 %v362
    %v665 = vunpack.c.l.b16 %v363
    %v666 = vunpack.c.h.b16 %v363
    %v667 = vunpack.c.l.b16 %v364
    %v668 = vunpack.c.h.b16 %v364
    %v669 = vunpack.c.l.b16 %v365
    %v670 = vunpack.c.h.b16 %v365
    %v671 = vunpack.c.l.b16 %v366
    %v672 = vunpack.c.h.b16 %v366
    %v673 = vunpack.c.l.b16 %v367
    %v674 = vunpack.c.h.b16 %v367
    %v675 = vunpack.c.l.b16 %v368
    %v676 = vunpack.c.h.b16 %v368
    %v677 = vunpack.c.l.b16 %v369
    %v678 = vunpack.c.h.b16 %v369
    %v679 = vunpack.c.l.b16 %v370
    %v680 = vunpack.c.h.b16 %v370
    %v681 = vpack.c.b16 %v493, %v489
    %v682 = vpack.c.b16 %v494, %v490
    %v683 = vpack.c.b16 %v495, %v491
    %v684 = vpack.c.b16 %v496, %v492
    %v685 = vpack.c.b16 %v501, %v497
    %v686 = vpack.c.b16 %v502, %v498
    %v687 = vpack.c.b16 %v503, %v499
    %v688 = vpack.c.b16 %v504, %v500
    %v689 = vpack.c.b16 %v509, %v505
    %v690 = vpack.c.b16 %v510, %v506
    %v691 = vpack.c.b16 %v511, %v507
    %v692 = vpack.c.b16 %v512, %v508
    %v693 = vpack.c.b16 %v517, %v513
    %v694 = vpack.c.b16 %v518, %v514
    %v695 = vpack.c.b16 %v519, %v515
    %v696 = vpack.c.b16 %v520, %v516
    %v697 = vpack.c.b16 %v525, %v521
    %v698 = vpack.c.b16 %v526, %v522
    %v699 = vpack.c.b16 %v527, %v523
    %v700 = vpack.c.b16 %v528, %v524
    %v701 = vpack.c.b16 %v533, %v529
    %v702 = vpack.c.b16 %v534, %v530
    %v703 = vpack.c.b16 %v535, %v531
    %v704 = vpack.c.b16 %v536, %v532
    %v705 = vpack.c.b16 %v541, %v537
    %v706 = vpack.c.b16 %v542, %v538
    %v707 = vpack.c.b16 %v543, %v539
    %v708 = vpack.c.b16 %v544, %v540
    %v709 = vpack.c.b16 %v549, %v545
    %v710 = vpack.c.b16 %v550, %v546
    %v711 = vpack.c.b16 %v551, %v547
    %v712 = vpack.c.b16 %v552, %v548
    %v713 = vpack.c.b16 %v557, %v553
    %v714 = vpack.c.b16 %v558, %v554
    %v715 = vpack.c.b16 %v559, %v555
    %v716 = vpack.c.b16 %v560, %v556
    %v717 = vpack.c.b16 %v565, %v561
    %v718 = vpack.c.b16 %v566, %v562
    %v719 = vpack.c.b16 %v567, %v563
    %v720 = vpack.c.b16 %v568, %v564
    %v721 = vpack.c.b16 %v573, %v569
    %v722 = vpack.c.b16 %v574, %v570
    %v723 = vpack.c.b16 %v575, %v571
    %v724 = vpack.c.b16 %v576, %v572
    %v725 = vpack.c.b16 %v581, %v577
    %v726 = vpack.c.b16 %v582, %v578
    %v727 = vpack.c.b16 %v583, %v579
    %v728 = vpack.c.b16 %v584, %v580
    %v729 = vpack.c.b16 %v589, %v585
    %v730 = vpack.c.b16 %v590, %v586
    %v731 = vpack.c.b16 %v591, %v587
    %v732 = vpack.c.b16 %v592, %v588
    %v733 = vpack.c.b16 %v597, %v593
    %v734 = vpack.c.b16 %v598, %v594
    %v735 = vpack.c.b16 %v599, %v595
    %v736 = vpack.c.b16 %v600, %v596
    %v737 = vpack.c.b16 %v605, %v601
    %v738 = vpack.c.b16 %v606, %v602
    %v739 = vpack.c.b16 %v607, %v603
    %v740 = vpack.c.b16 %v608, %v604
    %v741 = vpack.c.b16 %v613, %v609
    %v742 = vpack.c.b16 %v614, %v610
    %v743 = vpack.c.b16 %v615, %v611
    %v744 = vpack.c.b16 %v616, %v612
    %v745 = vpack.c.b16 %v621, %v617
    %v746 = vpack.c.b16 %v622, %v618
    %v747 = vpack.c.b16 %v623, %v619
    %v748 = vpack.c.b16 %v624, %v620
    %v749 = vpack.c.b16 %v629, %v625
    %v750 = vpack.c.b16 %v630, %v626
    %v751 = vpack.c.b16 %v631, %v627
    %v752 = vpack.c.b16 %v632, %v628
    %v753 = vpack.c.b16 %v637, %v633
    %v754 = vpack.c.b16 %v638, %v634
    %v755 = vpack.c.b16 %v639, %v635
    %v756 = vpack.c.b16 %v640, %v636
    %v757 = vpack.c.b16 %v645, %v641
    %v758 = vpack.c.b16 %v646, %v642
    %v759 = vpack.c.b16 %v647, %v643
    %v760 = vpack.c.b16 %v648, %v644
    %v761 = vpack.c.b16 %v653, %v649
    %v762 = vpack.c.b16 %v654, %v650
    %v763 = vpack.c.b16 %v655, %v651
    %v764 = vpack.c.b16 %v656, %v652
    %v765 = vpack.c.b16 %v661, %v657
    %v766 = vpack.c.b16 %v662, %v658
    %v767 = vpack.c.b16 %v663, %v659
    %v768 = vpack.c.b16 %v664, %v660
    %v769 = vpack.c.b16 %v669, %v665
    %v770 = vpack.c.b16 %v670, %v666
    %v771 = vpack.c.b16 %v671, %v667
    %v772 = vpack.c.b16 %v672, %v668
    %v773 = vpack.c.b16 %v677, %v673
    %v774 = vpack.c.b16 %v678, %v674
    %v775 = vpack.c.b16 %v679, %v675
    %v776 = vpack.c.b16 %v680, %v676
    %873 = vmatprep.subr.bf16.mxu0 %v682
    %874 = vmatpush1.bf16.msra.mxu0 %v681
    %875 = vmatprep.subr.bf16.mxu0 %v686
    %876 = vmatpush1.bf16.msra.mxu0 %v685
    %877 = vmatprep.subr.bf16.mxu0 %v690
    %878 = vmatpush1.bf16.msra.mxu0 %v689
    %879 = vmatprep.subr.bf16.mxu0 %v694
    %880 = vmatpush1.bf16.msra.mxu0 %v693
    %881 = vmatprep.subr.bf16.mxu0 %v698
    %882 = vmatpush1.bf16.msra.mxu0 %v697
    %883 = vmatprep.subr.bf16.mxu0 %v702
    %884 = vmatpush1.bf16.msra.mxu0 %v701
    %885 = vmatprep.subr.bf16.mxu0 %v706
    %886 = vmatpush1.bf16.msra.mxu0 %v705
    %887 = vmatprep.subr.bf16.mxu0 %v710
    %888 = vmatpush1.bf16.msra.mxu0 %v709
    %889 = vmatprep.subr.bf16.mxu0 %v714
    %890 = vmatpush1.bf16.msra.mxu0 %v713
    %891 = vmatprep.subr.bf16.mxu0 %v718
    %892 = vmatpush1.bf16.msra.mxu0 %v717
    %893 = vmatprep.subr.bf16.mxu0 %v722
    %894 = vmatpush1.bf16.msra.mxu0 %v721
    %895 = vmatprep.subr.bf16.mxu0 %v726
    %896 = vmatpush1.bf16.msra.mxu0 %v725
    %897 = vmatprep.subr.bf16.mxu0 %v730
    %898 = vmatpush1.bf16.msra.mxu0 %v729
    %899 = vmatprep.subr.bf16.mxu0 %v734
    %900 = vmatpush1.bf16.msra.mxu0 %v733
    %901 = vmatprep.subr.bf16.mxu0 %v738
    %902 = vmatpush1.bf16.msra.mxu0 %v737
    %903 = vmatprep.subr.bf16.mxu0 %v742
    %904 = vmatpush1.bf16.msra.mxu0 %v741
    %905 = vmatprep.mubr.bf16.mxu0 %v272
    %906 = vmatmul.mubr.bf16.gmra.mrb[0].mxu0 %v271
    %v907 = vpop.f32.mrb[0].mxu0
    %v908 = vadd.f32 %v376, %v907
    %v909 = vpop.f32.mrb[0].mxu0
    %v910 = vadd.f32 %v380, %v909
    %v911 = vpop.f32.mrb[0].mxu0
    %v912 = vpop.f32.mrb[0].mxu0
    %913 = vdwg.mxu0
    %914 = vmatprep.subr.bf16.mxu0 %v746
    %915 = vmatpush1.bf16.msra.mxu0 %v745
    %916 = vmatprep.subr.bf16.mxu0 %v750
    %917 = vmatpush1.bf16.msra.mxu0 %v749
    %918 = vmatprep.subr.bf16.mxu0 %v754
    %919 = vmatpush1.bf16.msra.mxu0 %v753
    %920 = vmatprep.subr.bf16.mxu0 %v758
    %921 = vmatpush1.bf16.msra.mxu0 %v757
    %922 = vmatprep.subr.bf16.mxu0 %v762
    %923 = vmatpush1.bf16.msra.mxu0 %v761
    %924 = vmatprep.subr.bf16.mxu0 %v766
    %925 = vmatpush1.bf16.msra.mxu0 %v765
    %926 = vmatprep.subr.bf16.mxu0 %v770
    %927 = vmatpush1.bf16.msra.mxu0 %v769
    %928 = vmatprep.subr.bf16.mxu0 %v774
    %929 = vmatpush1.bf16.msra.mxu0 %v773
    %930 = vmatprep.subr.bf16.mxu0 0
    %931 = vmatpush1.bf16.msra.mxu0 0
    %932 = vmatprep.subr.bf16.mxu0 0
    %933 = vmatpush1.bf16.msra.mxu0 0
    %934 = vmatprep.subr.bf16.mxu0 0
    %935 = vmatpush1.bf16.msra.mxu0 0
    %936 = vmatprep.subr.bf16.mxu0 0
    %937 = vmatpush1.bf16.msra.mxu0 0
    %938 = vmatprep.subr.bf16.mxu0 0
    %939 = vmatpush1.bf16.msra.mxu0 0
    %940 = vmatprep.subr.bf16.mxu0 0
    %941 = vmatpush1.bf16.msra.mxu0 0
    %942 = vmatprep.subr.bf16.mxu0 0
    %943 = vmatpush1.bf16.msra.mxu0 0
    %944 = vmatprep.subr.bf16.mxu0 0
    %945 = vmatpush1.bf16.msra.mxu0 0
    %946 = vmatprep.mubr.bf16.mxu0 0
    %947 = vmatmul.mubr.bf16.gmra.mrb[0].mxu0 %v274
    %v948 = vpop.f32.mrb[0].mxu0
    %v949 = vadd.f32 %v908, %v948
    %v950 = vpop.f32.mrb[0].mxu0
    %v951 = vadd.f32 %v910, %v950
    %v952 = vpop.f32.mrb[0].mxu0
    %v953 = vpop.f32.mrb[0].mxu0
    %954 = vdwg.mxu0
    %955 = vmatprep.subr.bf16.mxu0 %v684
    %956 = vmatpush1.bf16.msra.mxu0 %v683
    %957 = vmatprep.subr.bf16.mxu0 %v688
    %958 = vmatpush1.bf16.msra.mxu0 %v687
    %959 = vmatprep.subr.bf16.mxu0 %v692
    %960 = vmatpush1.bf16.msra.mxu0 %v691
    %961 = vmatprep.subr.bf16.mxu0 %v696
    %962 = vmatpush1.bf16.msra.mxu0 %v695
    %963 = vmatprep.subr.bf16.mxu0 %v700
    %964 = vmatpush1.bf16.msra.mxu0 %v699
    %965 = vmatprep.subr.bf16.mxu0 %v704
    %966 = vmatpush1.bf16.msra.mxu0 %v703
    %967 = vmatprep.subr.bf16.mxu0 %v708
    %968 = vmatpush1.bf16.msra.mxu0 %v707
    %969 = vmatprep.subr.bf16.mxu0 %v712
    %970 = vmatpush1.bf16.msra.mxu0 %v711
    %971 = vmatprep.subr.bf16.mxu0 %v716
    %972 = vmatpush1.bf16.msra.mxu0 %v715
    %973 = vmatprep.subr.bf16.mxu0 %v720
    %974 = vmatpush1.bf16.msra.mxu0 %v719
    %975 = vmatprep.subr.bf16.mxu0 %v724
    %976 = vmatpush1.bf16.msra.mxu0 %v723
    %977 = vmatprep.subr.bf16.mxu0 %v728
    %978 = vmatpush1.bf16.msra.mxu0 %v727
    %979 = vmatprep.subr.bf16.mxu0 %v732
    %980 = vmatpush1.bf16.msra.mxu0 %v731
    %981 = vmatprep.subr.bf16.mxu0 %v736
    %982 = vmatpush1.bf16.msra.mxu0 %v735
    %983 = vmatprep.subr.bf16.mxu0 %v740
    %984 = vmatpush1.bf16.msra.mxu0 %v739
    %985 = vmatprep.subr.bf16.mxu0 %v744
    %986 = vmatpush1.bf16.msra.mxu0 %v743
    %987 = vmatprep.mubr.bf16.mxu0 %v272
    %988 = vmatmul.mubr.bf16.gmra.mrb[0].mxu0 %v271
    %v989 = vpop.f32.mrb[0].mxu0
    %v990 = vadd.f32 %v384, %v989
    %v991 = vpop.f32.mrb[0].mxu0
    %v992 = vadd.f32 %v388, %v991
    %v993 = vpop.f32.mrb[0].mxu0
    %v994 = vpop.f32.mrb[0].mxu0
    %995 = vdwg.mxu0
    %996 = vmatprep.subr.bf16.mxu0 %v748
    %997 = vmatpush1.bf16.msra.mxu0 %v747
    %998 = vmatprep.subr.bf16.mxu0 %v752
    %999 = vmatpush1.bf16.msra.mxu0 %v751
    %1000 = vmatprep.subr.bf16.mxu0 %v756
    %1001 = vmatpush1.bf16.msra.mxu0 %v755
    %1002 = vmatprep.subr.bf16.mxu0 %v760
    %1003 = vmatpush1.bf16.msra.mxu0 %v759
    %1004 = vmatprep.subr.bf16.mxu0 %v764
    %1005 = vmatpush1.bf16.msra.mxu0 %v763
    %1006 = vmatprep.subr.bf16.mxu0 %v768
    %1007 = vmatpush1.bf16.msra.mxu0 %v767
    %1008 = vmatprep.subr.bf16.mxu0 %v772
    %1009 = vmatpush1.bf16.msra.mxu0 %v771
    %1010 = vmatprep.subr.bf16.mxu0 %v776
    %1011 = vmatpush1.bf16.msra.mxu0 %v775
    %1012 = vmatprep.subr.bf16.mxu0 0
    %1013 = vmatpush1.bf16.msra.mxu0 0
    %1014 = vmatprep.subr.bf16.mxu0 0
    %1015 = vmatpush1.bf16.msra.mxu0 0
    %1016 = vmatprep.subr.bf16.mxu0 0
    %1017 = vmatpush1.bf16.msra.mxu0 0
    %1018 = vmatprep.subr.bf16.mxu0 0
    %1019 = vmatpush1.bf16.msra.mxu0 0
    %1020 = vmatprep.subr.bf16.mxu0 0
    %1021 = vmatpush1.bf16.msra.mxu0 0
    %1022 = vmatprep.subr.bf16.mxu0 0
    %1023 = vmatpush1.bf16.msra.mxu0 0
    %1024 = vmatprep.subr.bf16.mxu0 0
    %1025 = vmatpush1.bf16.msra.mxu0 0
    %1026 = vmatprep.subr.bf16.mxu0 0
    %1027 = vmatpush1.bf16.msra.mxu0 0
    %1028 = vmatprep.mubr.bf16.mxu0 0
    %1029 = vmatmul.mubr.bf16.gmra.mrb[0].mxu0 %v274
    %v1030 = vpop.f32.mrb[0].mxu0
    %v1031 = vadd.f32 %v990, %v1030
    %v1032 = vpop.f32.mrb[0].mxu0
    %v1033 = vadd.f32 %v992, %v1032
    %v1034 = vpop.f32.mrb[0].mxu0
    %v1035 = vpop.f32.mrb[0].mxu0
    %1036 = vdwg.mxu0
    %v1037 = vxor.u32 %v949, 2147483648
    %v1038 = vxor.u32 %v951, 2147483648
    %v1039 = vxor.u32 %v1031, 2147483648
    %v1040 = vmul.f32 %v1037, 1.442695
    %v1041 = vpow.pop %v1040
    %v1042 = vmul.f32 %v1038, 1.442695
    %v1043 = vpow.pop %v1042
    %v1044 = vmul.f32 %v1039, 1.442695
    %v1045 = vpow.pop %v1044
    %v1046 = vadd.f32 %v1041, 1.0
    %v1047 = vadd.f32 %v1043, 1.0
    %v1048 = vadd.f32 %v1045, 1.0
    %v1049 = vrcp.pop %v1046
    %v1050 = vmul.f32 1.0, %v1049
    %v1051 = vrcp.pop %v1047
    %v1052 = vmul.f32 1.0, %v1051
    %v1053 = vrcp.pop %v1048
    %v1054 = vmul.f32 1.0, %v1053
    %v1055 = vtanh.pop %v1033
    %v1056 = vld [vmem:[#allocation7] sm:$0xff]
    %v1057 = vmul.f32 %v1052, %v1056
    %v1058 = vmul.f32 %v1050, %v1055
    %v1059 = vadd.f32 %v1057, %v1058
    %v1060 = vtanh.pop %v1059
    %v1061 = vmul.f32 %v1054, %v1060
    %1062 = vst [vmem:[#allocation22] sm:$0xff] %v1059
    %1063 = vst [vmem:[#allocation20] sm:$0xff] %v1061
    %v1064 = vpack.c.bf16 %v1061, %v1061
    %v1065 = vld [vmem:[#allocation16] sm:$0xf]
    %v1066 = vld [vmem:[#allocation16 + $0x4] sm:$0xf]
    %v1067 = vld [vmem:[#allocation16 + $0x8] sm:$0xf]
    %v1068 = vld [vmem:[#allocation16 + $0xc] sm:$0xf]
    %v1069 = vld [vmem:[#allocation16 + $0x10] sm:$0xf]
    %v1070 = vld [vmem:[#allocation16 + $0x14] sm:$0xf]
    %v1071 = vld [vmem:[#allocation16 + $0x18] sm:$0xf]
    %v1072 = vld [vmem:[#allocation16 + $0x1c] sm:$0xf]
    %v1073 = vld [vmem:[#allocation16 + $0x20] sm:$0xf]
    %v1074 = vld [vmem:[#allocation16 + $0x24] sm:$0xf]
    %v1075 = vld [vmem:[#allocation16 + $0x28] sm:$0xf]
    %v1076 = vld [vmem:[#allocation16 + $0x2c] sm:$0xf]
    %v1077 = vld [vmem:[#allocation16 + $0x30] sm:$0xf]
    %v1078 = vld [vmem:[#allocation16 + $0x34] sm:$0xf]
    %v1079 = vld [vmem:[#allocation16 + $0x38] sm:$0xf]
    %v1080 = vld [vmem:[#allocation16 + $0x3c] sm:$0xf]
    %v1081 = vld [vmem:[#allocation17] sm:$0x1]
    %v1083 = vlaneseq
    %v1084 = vshrl.u32 %v1083, 7
    %v1085 = vsub.s32 0, %v1084
    %v1086 = vrot.slane %v1081, %v1085
    %v1104 = vunpack.c.l.b16 %v1065
    %v1105 = vunpack.c.l.b16 %v1066
    %v1106 = vunpack.c.l.b16 %v1067
    %v1107 = vunpack.c.l.b16 %v1068
    %v1108 = vunpack.c.l.b16 %v1069
    %v1109 = vunpack.c.l.b16 %v1070
    %v1110 = vunpack.c.l.b16 %v1071
    %v1111 = vunpack.c.l.b16 %v1072
    %v1112 = vunpack.c.l.b16 %v1073
    %v1113 = vunpack.c.l.b16 %v1074
    %v1114 = vunpack.c.l.b16 %v1075
    %v1115 = vunpack.c.l.b16 %v1076
    %v1116 = vunpack.c.l.b16 %v1077
    %v1117 = vunpack.c.l.b16 %v1078
    %v1118 = vunpack.c.l.b16 %v1079
    %v1119 = vunpack.c.l.b16 %v1080
    %v1120 = vpack.c.b16 %v1105, %v1104
    %v1121 = vpack.c.b16 %v1107, %v1106
    %v1122 = vpack.c.b16 %v1109, %v1108
    %v1123 = vpack.c.b16 %v1111, %v1110
    %v1124 = vpack.c.b16 %v1113, %v1112
    %v1125 = vpack.c.b16 %v1115, %v1114
    %v1126 = vpack.c.b16 %v1117, %v1116
    %v1127 = vpack.c.b16 %v1119, %v1118
    %1136 = vmatprep.subr.bf16.mxu0 0
    %1137 = vmatpush1.bf16.msra.mxu0 %v1120
    %1138 = vmatprep.subr.bf16.mxu0 0
    %1139 = vmatpush1.bf16.msra.mxu0 %v1121
    %1140 = vmatprep.subr.bf16.mxu0 0
    %1141 = vmatpush1.bf16.msra.mxu0 %v1122
    %1142 = vmatprep.subr.bf16.mxu0 0
    %1143 = vmatpush1.bf16.msra.mxu0 %v1123
    %1144 = vmatprep.subr.bf16.mxu0 0
    %1145 = vmatpush1.bf16.msra.mxu0 %v1124
    %1146 = vmatprep.subr.bf16.mxu0 0
    %1147 = vmatpush1.bf16.msra.mxu0 %v1125
    %1148 = vmatprep.subr.bf16.mxu0 0
    %1149 = vmatpush1.bf16.msra.mxu0 %v1126
    %1150 = vmatprep.subr.bf16.mxu0 0
    %1151 = vmatpush1.bf16.msra.mxu0 %v1127
    %1152 = vmatprep.subr.bf16.mxu0 0
    %1153 = vmatpush1.bf16.msra.mxu0 0
    %1154 = vmatprep.subr.bf16.mxu0 0
    %1155 = vmatpush1.bf16.msra.mxu0 0
    %1156 = vmatprep.subr.bf16.mxu0 0
    %1157 = vmatpush1.bf16.msra.mxu0 0
    %1158 = vmatprep.subr.bf16.mxu0 0
    %1159 = vmatpush1.bf16.msra.mxu0 0
    %1160 = vmatprep.subr.bf16.mxu0 0
    %1161 = vmatpush1.bf16.msra.mxu0 0
    %1162 = vmatprep.subr.bf16.mxu0 0
    %1163 = vmatpush1.bf16.msra.mxu0 0
    %1164 = vmatprep.subr.bf16.mxu0 0
    %1165 = vmatpush1.bf16.msra.mxu0 0
    %1166 = vmatprep.subr.bf16.mxu0 0
    %1167 = vmatpush1.bf16.msra.mxu0 0
    %1168 = vmatprep.mubr.bf16.mxu0 0
    %1169 = vmatmul.mubr.bf16.gmra.mrb[0].mxu0 %v1064
    %v1170 = vpop.f32.mrb[0].mxu0
    %v1171 = vadd.f32 %v1086, %v1170
    %v1172 = vpop.f32.mrb[0].mxu0
    %v1173 = vpop.f32.mrb[0].mxu0
    %v1174 = vpop.f32.mrb[0].mxu0
    %1175 = vdwg.mxu0
    %v1176 = vld [vmem:[#allocation8] sm:$0xff]
    %v1177 = vadd.f32 %v1171, %v1176
    %vm1178 = vcmask 130048
    %v1179 = vsel %vm1178, %v1177, -inf
    %1180 = vmax.xlane.f32.xlu0 %v1179
    %v1181 = vpop.xlane.xlu0 %1180
    %v1182 = vsub.f32 %v1177, %v1181
    %v1183 = vmul.f32 %v1182, 1.442695
    %v1184 = vpow.pop %v1183
    %v1185 = vsel %vm1178, %v1184, 0.0
    %1186 = vadd.xlane.f32.xlu0 %v1185
    %v1187 = vpop.xlane.xlu0 %1186
    %v1188 = vrcp.pop %v1187
    %v1189 = vmul.f32 %v1184, %v1188
    %v1190 = vsel %vm1178, %v1189, 0.0
    %v1191 = vlaneseq
    %v1192 = vand.u32 %v1191, 127
    %vm1193 = vcmp.lt.s32.totalorder %v1192, 16
    %v1194 = vsel %vm1193, %v1190, %v1171
    %1195 = vst [vmem:[#allocation19] sm:$0xff] %v1194
    // Predicated region
    $region82: #{ppo_forward.1} parent=1 // pred_check
      _
    $region83: #{ppo_forward.1} parent=1 // pred_check_branch
      %1197 = sbr.rel (0) target = $region85
    $region84: #{ppo_forward.1} parent=1 // pred_region
      %s1199 = ssub.s32 128, 128
      %1200 = vsyncadd [#allocation4], %s1199
      %s1202 = sshll.u32 [#allocation19], 4
      %s1203 = int_to_ptr.vmem [resolvable:$true] %s1202
      %1205 = dma.vmem_to_hbm [thread:$0]  %s1203, 128, %s10, [#allocation4]
    $region85: #{ppo_forward.1} parent=1 // pred_fallthru
      _
    // Predicated region
    $region86: #{ppo_forward.1} parent=1 // pred_check
      _
    $region87: #{ppo_forward.1} parent=1 // pred_check_branch
      %1207 = sbr.rel (0) target = $region89
    $region88: #{ppo_forward.1} parent=1 // pred_region
      %s1209 = ssub.s32 128, 128
      %1210 = vsyncadd [#allocation21], %s1209
      %s1212 = sshll.u32 [#allocation20], 4
      %s1213 = int_to_ptr.vmem [resolvable:$true] %s1212
      %1215 = dma.vmem_to_hbm [thread:$0]  %s1213, 128, %s11, [#allocation21]
    $region89: #{ppo_forward.1} parent=1 // pred_fallthru
      _
    // Predicated region
    $region90: #{ppo_forward.1} parent=1 // pred_check
      _
    $region91: #{ppo_forward.1} parent=1 // pred_check_branch
      %1217 = sbr.rel (0) target = $region93
    $region92: #{ppo_forward.1} parent=1 // pred_region
      %s1219 = ssub.s32 128, 128
      %1220 = vsyncadd [#allocation21], %s1219
      %s1222 = sshll.u32 [#allocation22], 4
      %s1223 = int_to_ptr.vmem [resolvable:$true] %s1222
      %1225 = dma.vmem_to_hbm [thread:$0]  %s1223, 128, %s12, [#allocation21]
    $region93: #{ppo_forward.1} parent=1 // pred_fallthru
      _
    // Predicated region
    $region94: #{ppo_forward.1} parent=1 // pred_check
      _
    $region95: #{ppo_forward.1} parent=1 // pred_check_branch
      %1227 = sbr.rel (0) target = $region97
    $region96: #{ppo_forward.1} parent=1 // pred_region
      %1228 = dma.done [#allocation4], 128
    $region97: #{ppo_forward.1} parent=1 // pred_fallthru
      _
    // Predicated region
    $region98: #{ppo_forward.1} parent=1 // pred_check
      _
    $region99: #{ppo_forward.1} parent=1 // pred_check_branch
      %1230 = sbr.rel (0) target = $region101
    $region100: #{ppo_forward.1} parent=1 // pred_region
      %1231 = dma.done [#allocation21], 128
    $region101: #{ppo_forward.1} parent=1 // pred_fallthru
      _
    // Predicated region
    $region102: #{ppo_forward.1} parent=1 // pred_check
      _
    $region103: #{ppo_forward.1} parent=1 // pred_check_branch
      %1233 = sbr.rel (0) target = $region105
    $region104: #{ppo_forward.1} parent=1 // pred_region
      %1234 = dma.done [#allocation21], 128
    $region105: #{ppo_forward.1} parent=1 // pred_fallthru
      _
    %1235 = vsyncpa [#allocation3], 1
    %1236 = vsyncpa [#allocation6], 1
    %1237 = vsyncpa [#allocation9], 1
    %1238 = vsyncpa [#allocation12], 1
    %1239 = vsyncpa [#allocation15], 1
    %1240 = vsyncpa [#allocation18], 1
    %1241 = vsyncpa [#allocation4], 1
    %1242 = vsyncpa [#allocation21], 1

</llo_original>
